<compile_context>
chip_gen: v6e
topology: v6e:2x2x1
jax: 0.10.0
libtpu: 0.0.40
codegen_flags: <defaults>
</compile_context>

<pallas_src>
import jax
import jax.numpy as jnp
from jax.experimental import pallas as pl
from jax.experimental.pallas import tpu as pltpu


def _conv1x1_kernel(x_ref, w_ref, b_ref, o_ref):
    # x_ref: (NB, C_in, T_HW)   w_ref: (C_out, C_in)   b_ref: (C_out, 1) f32
    # o_ref: (NB, C_out, T_HW)  -- T_HW (lane axis) is lane-dense.
    w = w_ref[...]
    b = b_ref[...]                                     # (C_out, 1), f32
    for bi in range(x_ref.shape[0]):                   # small static unroll
        acc = jnp.dot(w, x_ref[bi],
                      preferred_element_type=jnp.float32,
                      precision=jax.lax.Precision.HIGHEST)
        o_ref[bi] = (acc + b).astype(o_ref.dtype)      # cast only on store


def _vmem_capacity_bytes():
    try:
        return int(pltpu.get_tpu_info().vmem_capacity_bytes)
    except Exception:
        return 64 << 20        # conservative: v7x per-TensorCore VMEM


def _dimension_semantics(grid):
    """Shard the largest grid axis across v7x's 2 TensorCores."""
    try:
        is_v7 = "v7" in jax.devices()[0].device_kind.lower()
    except Exception:
        is_v7 = False
    if is_v7:
        if grid[1] >= grid[0] and grid[1] >= 2:
            return (pltpu.PARALLEL, pltpu.CORE_PARALLEL)
        if grid[0] >= 2:
            return (pltpu.CORE_PARALLEL, pltpu.PARALLEL)
    return ("parallel", "parallel")      # single-TC chips (v5e/v6e)


def _choose_tiles(n, c_in, c_out, hw, itemsize):
    """Derive (nb, t_hw, grid, vmem_limit) from shapes/dtype and VMEM budget."""
    vmem_cap = _vmem_capacity_bytes()
    vmem_budget = (vmem_cap * 3) // 8          # cap on double-buffered tiles
    target_x_bytes = 2 << 20                   # aim ~2 MiB of x per grid step

    # ---- spatial tile: multiple of 128 lanes, VMEM-bounded -------------
    lanes = target_x_bytes // max(1, c_in * itemsize)
    lanes = max(128, (lanes // 128) * 128)
    per_lane = 2 * (c_in + c_out) * itemsize   # x + out, double-buffered
    lanes_cap = max(128, ((vmem_budget // per_lane) // 128) * 128)
    lanes = min(lanes, lanes_cap)
    # Full extent when it fits (hw < 128 is legal but lane-masked -> perf only).
    t_hw = hw if hw <= lanes else lanes

    # ---- images per step: amortize the ~0.35us step overhead -----------
    per_image = (c_in + c_out) * t_hw * itemsize
    nb = max(1, (1 << 20) // max(1, per_image))            # >= ~1 MiB / step
    nb = min(nb, n, 8)                                      # bound the unroll
    nb = min(nb, max(1, vmem_budget // (2 * per_image)))
    while n % nb:                                           # clean batch blocks
        nb -= 1

    grid = (n // nb, pl.cdiv(hw, t_hw))

    working = 2 * nb * per_image + c_out * c_in * itemsize + c_out * 4
    vmem_limit = int(min((vmem_cap * 3) // 4,
                         max(32 << 20, working + (8 << 20))))
    return nb, t_hw, grid, vmem_limit


@jax.jit
def conv_out_forward(x_nchw, weight, bias):
    """1x1 conv, stride 1, padding 0, with bias (PyTorch ConvOut forward).

    x_nchw : (N, C_in, H, W)
    weight : (C_out, C_in, 1, 1) or (C_out, C_in)
    bias   : (C_out,)
    returns (N, C_out, H, W)
    """
    n, c_in, h, w = x_nchw.shape
    c_out = bias.shape[0]
    hw = h * w

    # Free reshape (no data movement): NCHW -> (N, C_in, H*W).
    x_r = x_nchw.reshape(n, c_in, hw)
    itemsize = jnp.dtype(x_r.dtype).itemsize

    nb, t_hw, grid, vmem_limit = _choose_tiles(n, c_in, c_out, hw, itemsize)

    w_mat = weight.reshape(c_out, c_in).astype(x_r.dtype)     # (C_out, C_in)
    b_col = bias.astype(jnp.float32).reshape(c_out, 1)        # f32 end-to-end

    cost = pl.CostEstimate(
        flops=2 * n * hw * c_in * c_out,
        transcendentals=0,
        bytes_accessed=(n * c_in * hw * itemsize               # x
                        + n * c_out * hw * itemsize            # out
                        + c_out * c_in * itemsize              # weight
                        + c_out * 4),                          # bias (f32)
    )

    out_r = pl.pallas_call(
        _conv1x1_kernel,
        out_shape=jax.ShapeDtypeStruct((n, c_out, hw), x_r.dtype),
        grid_spec=pltpu.PrefetchScalarGridSpec(
            num_scalar_prefetch=0,
            grid=grid,
            in_specs=[
                # x tile: nb images x full C_in x t_hw lanes.
                pl.BlockSpec((nb, c_in, t_hw), lambda i, j: (i, 0, j)),
                # full weight, same block every step (stays resident).
                pl.BlockSpec((c_out, c_in), lambda i, j: (0, 0)),
                # full bias column, f32.
                pl.BlockSpec((c_out, 1), lambda i, j: (0, 0)),
            ],
            out_specs=pl.BlockSpec((nb, c_out, t_hw), lambda i, j: (i, 0, j)),
        ),
        compiler_params=pltpu.CompilerParams(
            dimension_semantics=_dimension_semantics(grid),
            vmem_limit_bytes=vmem_limit),
        cost_estimate=cost,
    )(x_r, w_mat, b_col)

    # Free reshape back: (N, C_out, H*W) -> NCHW.
    return out_r.reshape(n, c_out, h, w)


if __name__ == "__main__":
    # Small shapes consistent with the module: N=2, C_in=4, C_out=8, H=W=16.
    N, C_IN, C_OUT, H, W = 2, 4, 8, 16, 16

    key = jax.random.PRNGKey(0)
    kx, kw, kb = jax.random.split(key, 3)

    x = jax.random.normal(kx, (N, C_IN, H, W), dtype=jnp.float32)
    # Deterministic synthetic parameters, PyTorch Conv2d weight layout.
    weight = jax.random.normal(kw, (C_OUT, C_IN, 1, 1), dtype=jnp.float32) * 0.1
    bias = jax.random.normal(kb, (C_OUT,), dtype=jnp.float32) * 0.1

    out = conv_out_forward(x, weight, bias)
    out = jax.block_until_ready(out)

    # Reference (same math as nn.Conv2d k=1, true f32 contraction).
    ref = jnp.einsum("nchw,oc->nohw", x, weight.reshape(C_OUT, C_IN),
                     precision=jax.lax.Precision.HIGHEST)
    ref = ref + bias[None, :, None, None]

    assert out.shape == (N, C_OUT, H, W)
    assert jnp.allclose(out, ref, atol=1e-5, rtol=1e-5)

    print("KERNEL_OK")
</pallas_src>

<mosaic_0001>
module attributes {stable_mosaic.version = 11 : i64} {
  func.func @_conv1x1_kernel(%arg0: i32, %arg1: i32, %arg2: memref<2x4x256xf32, #tpu.memory_space<vmem>>, %arg3: memref<8x4xf32, #tpu.memory_space<vmem>>, %arg4: memref<8x1xf32, #tpu.memory_space<vmem>>, %arg5: memref<2x8x256xf32, #tpu.memory_space<vmem>>) attributes {dimension_semantics = [#tpu.dimension_semantics<parallel>, #tpu.dimension_semantics<parallel>], iteration_bounds = array<i64: 1, 1>, scalar_prefetch = 0 : i64, scratch_operands = 0 : i64, tpu.core_type = #tpu.core_type<tc>, window_params = [{transform_indices = @transform_0, window_bounds = array<i64: 2, 4, 256>}, {pipeline_mode = #tpu.pipeline_mode<synchronous>, transform_indices = @transform_1, window_bounds = array<i64: 8, 4>}, {pipeline_mode = #tpu.pipeline_mode<synchronous>, transform_indices = @transform_2, window_bounds = array<i64: 8, 1>}, {transform_indices = @transform_3, window_bounds = array<i64: 2, 8, 256>}]} {
    %c0 = arith.constant 0 : index
    %c0_0 = arith.constant 0 : index
    %0 = vector.load %arg3[%c0, %c0_0] : memref<8x4xf32, #tpu.memory_space<vmem>>, vector<8x4xf32>
    %c0_1 = arith.constant 0 : index
    %c0_2 = arith.constant 0 : index
    %1 = vector.load %arg4[%c0_1, %c0_2] : memref<8x1xf32, #tpu.memory_space<vmem>>, vector<8x1xf32>
    %c0_3 = arith.constant 0 : index
    %c0_4 = arith.constant 0 : index
    %c0_5 = arith.constant 0 : index
    %2 = vector.load %arg2[%c0_3, %c0_4, %c0_5] : memref<2x4x256xf32, #tpu.memory_space<vmem>>, vector<1x4x256xf32>
    %3 = vector.shape_cast %2 : vector<1x4x256xf32> to vector<4x256xf32>
    %cst = arith.constant dense<0.000000e+00> : vector<8x256xf32>
    %4 = tpu.matmul %0, %3, %cst {dimension_numbers = #tpu.dot_dimension_numbers<[1], [0], [0], [1], [0, 0, 1, 1], [], []>, precision = #tpu.contract_precision<fp32>} : vector<8x4xf32>, vector<4x256xf32>, vector<8x256xf32> -> vector<8x256xf32>
    %5 = vector.broadcast %1 : vector<8x1xf32> to vector<8x256xf32>
    %6 = arith.addf %4, %5 : vector<8x256xf32>
    %c0_6 = arith.constant 0 : index
    %c0_7 = arith.constant 0 : index
    %c0_8 = arith.constant 0 : index
    %7 = vector.load %arg5[%c0_6, %c0_7, %c0_8] : memref<2x8x256xf32, #tpu.memory_space<vmem>>, vector<1x8x256xf32>
    %8 = vector.shape_cast %7 : vector<1x8x256xf32> to vector<8x256xf32>
    %9 = vector.shape_cast %6 : vector<8x256xf32> to vector<1x8x256xf32>
    tpu.vector_store %arg5[%c0_6, %c0_7, %c0_8], %9 {strides = array<i32>} : memref<2x8x256xf32, #tpu.memory_space<vmem>>, vector<1x8x256xf32>,
    %c1 = arith.constant 1 : index
    %c0_9 = arith.constant 0 : index
    %c0_10 = arith.constant 0 : index
    %10 = vector.load %arg2[%c1, %c0_9, %c0_10] : memref<2x4x256xf32, #tpu.memory_space<vmem>>, vector<1x4x256xf32>
    %11 = vector.shape_cast %10 : vector<1x4x256xf32> to vector<4x256xf32>
    %cst_11 = arith.constant dense<0.000000e+00> : vector<8x256xf32>
    %12 = tpu.matmul %0, %11, %cst_11 {dimension_numbers = #tpu.dot_dimension_numbers<[1], [0], [0], [1], [0, 0, 1, 1], [], []>, precision = #tpu.contract_precision<fp32>} : vector<8x4xf32>, vector<4x256xf32>, vector<8x256xf32> -> vector<8x256xf32>
    %13 = vector.broadcast %1 : vector<8x1xf32> to vector<8x256xf32>
    %14 = arith.addf %12, %13 : vector<8x256xf32>
    %c1_12 = arith.constant 1 : index
    %c0_13 = arith.constant 0 : index
    %c0_14 = arith.constant 0 : index
    %15 = vector.load %arg5[%c1_12, %c0_13, %c0_14] : memref<2x8x256xf32, #tpu.memory_space<vmem>>, vector<1x8x256xf32>
    %16 = vector.shape_cast %15 : vector<1x8x256xf32> to vector<8x256xf32>
    %17 = vector.shape_cast %14 : vector<8x256xf32> to vector<1x8x256xf32>
    tpu.vector_store %arg5[%c1_12, %c0_13, %c0_14], %17 {strides = array<i32>} : memref<2x8x256xf32, #tpu.memory_space<vmem>>, vector<1x8x256xf32>,
    return
  }
  func.func @transform_0(%arg0: i32, %arg1: i32) -> (i32, i32, i32) {
    %c0_i32 = arith.constant 0 : i32
    %c0_i32_0 = arith.constant 0 : i32
    return %arg0, %c0_i32, %arg1 : i32, i32, i32
  }
  func.func @transform_1(%arg0: i32, %arg1: i32) -> (i32, i32) {
    %c0_i32 = arith.constant 0 : i32
    %c0_i32_0 = arith.constant 0 : i32
    %c0_i32_1 = arith.constant 0 : i32
    return %c0_i32, %c0_i32_0 : i32, i32
  }
  func.func @transform_2(%arg0: i32, %arg1: i32) -> (i32, i32) {
    %c0_i32 = arith.constant 0 : i32
    %c0_i32_0 = arith.constant 0 : i32
    %c0_i32_1 = arith.constant 0 : i32
    return %c0_i32, %c0_i32_0 : i32, i32
  }
  func.func @transform_3(%arg0: i32, %arg1: i32) -> (i32, i32, i32) {
    %c0_i32 = arith.constant 0 : i32
    %c0_i32_0 = arith.constant 0 : i32
    return %arg0, %c0_i32, %arg1 : i32, i32, i32
  }
}

</mosaic_0001>

<llo_original>
// kernel: conv_out_forward.1
$region0: #{conv_out_forward.1}
  #allocation0 [shape = 'u32[]', space=smem, size = 0x4, offset = 0x4, fixed_abs, tag = 'smem constant byte address 0x4 - core index']
  #allocation1 [shape = 'u32[144,128]{1,0:T(1,128)}', space=vmem, size = 0x12000, scoped, tag = 'internal scratch']
  %s0 = inlined_call_operand.vmem [shape: f32[2,4,256], index: 0, kind: input, shape index: {}]
  %s1 = inlined_call_operand.vmem [shape: f32[8,4], index: 1, kind: input, shape index: {}]
  %s2 = inlined_call_operand.vmem [shape: f32[8,1], index: 2, kind: input, shape index: {}]
  %s3 = inlined_call_operand.vmem [shape: f32[2,8,256], index: 3, kind: output, shape index: {}]
  %s4 = sld [smem:[#allocation0]]
  $region22: #{conv_out_forward.1} parent=0
    _
  %s6 = ssub.s32 1, %s4
  %s7 = scalar_select 0, %s6, %s4
  // Predicated region
  $region2: #{conv_out_forward.1} parent=0 // pred_check
    _
  $region3: #{conv_out_forward.1} parent=0 // pred_check_branch
    %9 = sbr.rel (0) target = $region5
  $region4: #{conv_out_forward.1} parent=0 // pred_region
    _
  $region5: #{conv_out_forward.1} parent=0 // pred_fallthru
    _
  // Predicated region
  $region6: #{conv_out_forward.1} parent=0 // pred_check
    _
  $region7: #{conv_out_forward.1} parent=0 // pred_check_branch
    %11 = sbr.rel (0) target = $region9
  $region8: #{conv_out_forward.1} parent=0 // pred_region
    _
  $region9: #{conv_out_forward.1} parent=0 // pred_fallthru
    _
  // Predicated region
  $region10: #{conv_out_forward.1} parent=0 // pred_check
    _
  $region11: #{conv_out_forward.1} parent=0 // pred_check_branch
    %13 = sbr.rel (0) target = $region13
  $region12: #{conv_out_forward.1} parent=0 // pred_region
    _
  $region13: #{conv_out_forward.1} parent=0 // pred_fallthru
    _
  %v14 = vld [vmem:[%s1] sm:$0xff]
  %v15 = vld [vmem:[%s2] sm:$0xff]
  %v16 = vld [vmem:[%s0] sm:$0xff]
  %18 = vset.pattern.permute.xlu0 0
  %19 = vperm.xlu0 %18, %v15
  %v20 = vpop.permute.xlu0 %19
  %v23 = vcombine.high %v16, %v16
  %vm24 = vcmask 31744
  %v26 = vsel %vm24, %v14, 0
  %vm28 = vcmask 1043456
  %v29 = vsel %vm28, %v16, 0
  %v31 = vsel %vm28, %v23, 0
  %33 = vmatprep.subr.mxu0 0.0
  %34 = vmatpush1.msra.mxu0 0.0
  %35 = vmatprep.subr.mxu0 0.0
  %36 = vmatpush1.msra.mxu0 0.0
  %37 = vmatprep.subr.mxu0 0.0
  %38 = vmatpush1.msra.mxu0 0.0
  %39 = vmatprep.subr.mxu0 0.0
  %40 = vmatpush1.msra.mxu0 0.0
  %41 = vmatprep.subr.mxu0 0.0
  %42 = vmatpush1.msra.mxu0 0.0
  %43 = vmatprep.subr.mxu0 0.0
  %44 = vmatpush1.msra.mxu0 0.0
  %45 = vmatprep.subr.mxu0 0.0
  %46 = vmatpush1.msra.mxu0 0.0
  %47 = vmatprep.subr.mxu0 0.0
  %48 = vmatpush1.msra.mxu0 0.0
  %49 = vmatprep.subr.mxu0 0.0
  %50 = vmatpush1.msra.mxu0 0.0
  %51 = vmatprep.subr.mxu0 0.0
  %52 = vmatpush1.msra.mxu0 0.0
  %53 = vmatprep.subr.mxu0 0.0
  %54 = vmatpush1.msra.mxu0 0.0
  %55 = vmatprep.subr.mxu0 0.0
  %56 = vmatpush1.msra.mxu0 0.0
  %57 = vmatprep.subr.mxu0 0.0
  %58 = vmatpush1.msra.mxu0 0.0
  %59 = vmatprep.subr.mxu0 0.0
  %60 = vmatpush1.msra.mxu0 0.0
  %61 = vmatprep.subr.mxu0 0.0
  %62 = vmatpush1.msra.mxu0 0.0
  %v63 = vand.u32 %v31, 4294901760
  %64 = vmatprep.subr.mxu0 %v63
  %v65 = vand.u32 %v29, 4294901760
  %66 = vmatpush1.msra.mxu0 %v65
  %67 = vmatprep.subr.mxu0 0.0
  %68 = vmatpush2.msra.mxu0 0.0
  %69 = vmatprep.subr.mxu0 0.0
  %70 = vmatpush2.msra.mxu0 0.0
  %71 = vmatprep.subr.mxu0 0.0
  %72 = vmatpush2.msra.mxu0 0.0
  %73 = vmatprep.subr.mxu0 0.0
  %74 = vmatpush2.msra.mxu0 0.0
  %75 = vmatprep.subr.mxu0 0.0
  %76 = vmatpush2.msra.mxu0 0.0
  %77 = vmatprep.subr.mxu0 0.0
  %78 = vmatpush2.msra.mxu0 0.0
  %79 = vmatprep.subr.mxu0 0.0
  %80 = vmatpush2.msra.mxu0 0.0
  %81 = vmatprep.subr.mxu0 0.0
  %82 = vmatpush2.msra.mxu0 0.0
  %83 = vmatprep.subr.mxu0 0.0
  %84 = vmatpush2.msra.mxu0 0.0
  %85 = vmatprep.subr.mxu0 0.0
  %86 = vmatpush2.msra.mxu0 0.0
  %87 = vmatprep.subr.mxu0 0.0
  %88 = vmatpush2.msra.mxu0 0.0
  %89 = vmatprep.subr.mxu0 0.0
  %90 = vmatpush2.msra.mxu0 0.0
  %91 = vmatprep.subr.mxu0 0.0
  %92 = vmatpush2.msra.mxu0 0.0
  %93 = vmatprep.subr.mxu0 0.0
  %94 = vmatpush2.msra.mxu0 0.0
  %95 = vmatprep.subr.mxu0 0.0
  %96 = vmatpush2.msra.mxu0 0.0
  %97 = vmatprep.subr.mxu0 0.0
  %98 = vmatpush2.msra.mxu0 0.0
  %99 = vmatprep.mubr.f32.mxu0 0.0
  %v100 = vand.u32 %v26, 4294901760
  %v101 = vsub.f32 %v26, %v100
  %v102 = vand.u32 %v101, 4294901760
  %v103 = vsub.f32 %v101, %v102
  %v104 = vand.u32 %v103, 4294901760
  %105 = vmatmul.mubr.f32.gmra.mxu0 %v104
  %v106 = vpop.f32.mrf.mxu0
  %v107 = vadd.f32 %v20, %v106
  %v108 = vpop.f32.mrf.mxu0
  %v109 = vadd.f32 %v20, %v108
  %110 = vdwg.mxu0
  %111 = vmatprep.subr.mxu0 0.0
  %112 = vmatpush1.msra.mxu0 0.0
  %113 = vmatprep.subr.mxu0 0.0
  %114 = vmatpush1.msra.mxu0 0.0
  %115 = vmatprep.subr.mxu0 0.0
  %116 = vmatpush1.msra.mxu0 0.0
  %117 = vmatprep.subr.mxu0 0.0
  %118 = vmatpush1.msra.mxu0 0.0
  %119 = vmatprep.subr.mxu0 0.0
  %120 = vmatpush1.msra.mxu0 0.0
  %121 = vmatprep.subr.mxu0 0.0
  %122 = vmatpush1.msra.mxu0 0.0
  %123 = vmatprep.subr.mxu0 0.0
  %124 = vmatpush1.msra.mxu0 0.0
  %125 = vmatprep.subr.mxu0 0.0
  %126 = vmatpush1.msra.mxu0 0.0
  %127 = vmatprep.subr.mxu0 0.0
  %128 = vmatpush1.msra.mxu0 0.0
  %129 = vmatprep.subr.mxu0 0.0
  %130 = vmatpush1.msra.mxu0 0.0
  %131 = vmatprep.subr.mxu0 0.0
  %132 = vmatpush1.msra.mxu0 0.0
  %133 = vmatprep.subr.mxu0 0.0
  %134 = vmatpush1.msra.mxu0 0.0
  %135 = vmatprep.subr.mxu0 0.0
  %136 = vmatpush1.msra.mxu0 0.0
  %137 = vmatprep.subr.mxu0 0.0
  %138 = vmatpush1.msra.mxu0 0.0
  %139 = vmatprep.subr.mxu0 0.0
  %140 = vmatpush1.msra.mxu0 0.0
  %v141 = vand.u32 %v31, 4294901760
  %v142 = vsub.f32 %v31, %v141
  %v143 = vand.u32 %v142, 4294901760
  %v144 = vsub.f32 %v142, %v143
  %v145 = vand.u32 %v144, 4294901760
  %146 = vmatprep.subr.mxu0 %v145
  %v147 = vand.u32 %v29, 4294901760
  %v148 = vsub.f32 %v29, %v147
  %v149 = vand.u32 %v148, 4294901760
  %v150 = vsub.f32 %v148, %v149
  %v151 = vand.u32 %v150, 4294901760
  %152 = vmatpush1.msra.mxu0 %v151
  %153 = vmatprep.subr.mxu0 0.0
  %154 = vmatpush2.msra.mxu0 0.0
  %155 = vmatprep.subr.mxu0 0.0
  %156 = vmatpush2.msra.mxu0 0.0
  %157 = vmatprep.subr.mxu0 0.0
  %158 = vmatpush2.msra.mxu0 0.0
  %159 = vmatprep.subr.mxu0 0.0
  %160 = vmatpush2.msra.mxu0 0.0
  %161 = vmatprep.subr.mxu0 0.0
  %162 = vmatpush2.msra.mxu0 0.0
  %163 = vmatprep.subr.mxu0 0.0
  %164 = vmatpush2.msra.mxu0 0.0
  %165 = vmatprep.subr.mxu0 0.0
  %166 = vmatpush2.msra.mxu0 0.0
  %167 = vmatprep.subr.mxu0 0.0
  %168 = vmatpush2.msra.mxu0 0.0
  %169 = vmatprep.subr.mxu0 0.0
  %170 = vmatpush2.msra.mxu0 0.0
  %171 = vmatprep.subr.mxu0 0.0
  %172 = vmatpush2.msra.mxu0 0.0
  %173 = vmatprep.subr.mxu0 0.0
  %174 = vmatpush2.msra.mxu0 0.0
  %175 = vmatprep.subr.mxu0 0.0
  %176 = vmatpush2.msra.mxu0 0.0
  %177 = vmatprep.subr.mxu0 0.0
  %178 = vmatpush2.msra.mxu0 0.0
  %179 = vmatprep.subr.mxu0 0.0
  %180 = vmatpush2.msra.mxu0 0.0
  %181 = vmatprep.subr.mxu0 0.0
  %182 = vmatpush2.msra.mxu0 0.0
  %183 = vmatprep.subr.mxu0 0.0
  %184 = vmatpush2.msra.mxu0 0.0
  %185 = vmatprep.mubr.f32.mxu0 0.0
  %v186 = vand.u32 %v26, 4294901760
  %187 = vmatmul.mubr.f32.gmra.mxu0 %v186
  %v188 = vpop.f32.mrf.mxu0
  %v189 = vadd.f32 %v107, %v188
  %v190 = vpop.f32.mrf.mxu0
  %v191 = vadd.f32 %v109, %v190
  %192 = vdwg.mxu0
  %193 = vmatprep.subr.mxu0 0.0
  %194 = vmatpush1.msra.mxu0 0.0
  %195 = vmatprep.subr.mxu0 0.0
  %196 = vmatpush1.msra.mxu0 0.0
  %197 = vmatprep.subr.mxu0 0.0
  %198 = vmatpush1.msra.mxu0 0.0
  %199 = vmatprep.subr.mxu0 0.0
  %200 = vmatpush1.msra.mxu0 0.0
  %201 = vmatprep.subr.mxu0 0.0
  %202 = vmatpush1.msra.mxu0 0.0
  %203 = vmatprep.subr.mxu0 0.0
  %204 = vmatpush1.msra.mxu0 0.0
  %205 = vmatprep.subr.mxu0 0.0
  %206 = vmatpush1.msra.mxu0 0.0
  %207 = vmatprep.subr.mxu0 0.0
  %208 = vmatpush1.msra.mxu0 0.0
  %209 = vmatprep.subr.mxu0 0.0
  %210 = vmatpush1.msra.mxu0 0.0
  %211 = vmatprep.subr.mxu0 0.0
  %212 = vmatpush1.msra.mxu0 0.0
  %213 = vmatprep.subr.mxu0 0.0
  %214 = vmatpush1.msra.mxu0 0.0
  %215 = vmatprep.subr.mxu0 0.0
  %216 = vmatpush1.msra.mxu0 0.0
  %217 = vmatprep.subr.mxu0 0.0
  %218 = vmatpush1.msra.mxu0 0.0
  %219 = vmatprep.subr.mxu0 0.0
  %220 = vmatpush1.msra.mxu0 0.0
  %221 = vmatprep.subr.mxu0 0.0
  %222 = vmatpush1.msra.mxu0 0.0
  %v223 = vand.u32 %v31, 4294901760
  %v224 = vsub.f32 %v31, %v223
  %225 = vmatprep.subr.mxu0 %v224
  %v226 = vand.u32 %v29, 4294901760
  %v227 = vsub.f32 %v29, %v226
  %228 = vmatpush1.msra.mxu0 %v227
  %229 = vmatprep.subr.mxu0 0.0
  %230 = vmatpush2.msra.mxu0 0.0
  %231 = vmatprep.subr.mxu0 0.0
  %232 = vmatpush2.msra.mxu0 0.0
  %233 = vmatprep.subr.mxu0 0.0
  %234 = vmatpush2.msra.mxu0 0.0
  %235 = vmatprep.subr.mxu0 0.0
  %236 = vmatpush2.msra.mxu0 0.0
  %237 = vmatprep.subr.mxu0 0.0
  %238 = vmatpush2.msra.mxu0 0.0
  %239 = vmatprep.subr.mxu0 0.0
  %240 = vmatpush2.msra.mxu0 0.0
  %241 = vmatprep.subr.mxu0 0.0
  %242 = vmatpush2.msra.mxu0 0.0
  %243 = vmatprep.subr.mxu0 0.0
  %244 = vmatpush2.msra.mxu0 0.0
  %245 = vmatprep.subr.mxu0 0.0
  %246 = vmatpush2.msra.mxu0 0.0
  %247 = vmatprep.subr.mxu0 0.0
  %248 = vmatpush2.msra.mxu0 0.0
  %249 = vmatprep.subr.mxu0 0.0
  %250 = vmatpush2.msra.mxu0 0.0
  %251 = vmatprep.subr.mxu0 0.0
  %252 = vmatpush2.msra.mxu0 0.0
  %253 = vmatprep.subr.mxu0 0.0
  %254 = vmatpush2.msra.mxu0 0.0
  %255 = vmatprep.subr.mxu0 0.0
  %256 = vmatpush2.msra.mxu0 0.0
  %257 = vmatprep.subr.mxu0 0.0
  %258 = vmatpush2.msra.mxu0 0.0
  %259 = vmatprep.subr.mxu0 0.0
  %260 = vmatpush2.msra.mxu0 0.0
  %261 = vmatprep.mubr.f32.mxu0 0.0
  %v262 = vand.u32 %v26, 4294901760
  %v263 = vsub.f32 %v26, %v262
  %264 = vmatmul.mubr.f32.gmra.mxu0 %v263
  %v265 = vpop.f32.mrf.mxu0
  %v266 = vadd.f32 %v189, %v265
  %v267 = vpop.f32.mrf.mxu0
  %v268 = vadd.f32 %v191, %v267
  %269 = vdwg.mxu0
  %270 = vmatprep.subr.mxu0 0.0
  %271 = vmatpush1.msra.mxu0 0.0
  %272 = vmatprep.subr.mxu0 0.0
  %273 = vmatpush1.msra.mxu0 0.0
  %274 = vmatprep.subr.mxu0 0.0
  %275 = vmatpush1.msra.mxu0 0.0
  %276 = vmatprep.subr.mxu0 0.0
  %277 = vmatpush1.msra.mxu0 0.0
  %278 = vmatprep.subr.mxu0 0.0
  %279 = vmatpush1.msra.mxu0 0.0
  %280 = vmatprep.subr.mxu0 0.0
  %281 = vmatpush1.msra.mxu0 0.0
  %282 = vmatprep.subr.mxu0 0.0
  %283 = vmatpush1.msra.mxu0 0.0
  %284 = vmatprep.subr.mxu0 0.0
  %285 = vmatpush1.msra.mxu0 0.0
  %286 = vmatprep.subr.mxu0 0.0
  %287 = vmatpush1.msra.mxu0 0.0
  %288 = vmatprep.subr.mxu0 0.0
  %289 = vmatpush1.msra.mxu0 0.0
  %290 = vmatprep.subr.mxu0 0.0
  %291 = vmatpush1.msra.mxu0 0.0
  %292 = vmatprep.subr.mxu0 0.0
  %293 = vmatpush1.msra.mxu0 0.0
  %294 = vmatprep.subr.mxu0 0.0
  %295 = vmatpush1.msra.mxu0 0.0
  %296 = vmatprep.subr.mxu0 0.0
  %297 = vmatpush1.msra.mxu0 0.0
  %298 = vmatprep.subr.mxu0 0.0
  %299 = vmatpush1.msra.mxu0 0.0
  %v300 = vand.u32 %v31, 4294901760
  %301 = vmatprep.subr.mxu0 %v300
  %v302 = vand.u32 %v29, 4294901760
  %303 = vmatpush1.msra.mxu0 %v302
  %304 = vmatprep.subr.mxu0 0.0
  %305 = vmatpush2.msra.mxu0 0.0
  %306 = vmatprep.subr.mxu0 0.0
  %307 = vmatpush2.msra.mxu0 0.0
  %308 = vmatprep.subr.mxu0 0.0
  %309 = vmatpush2.msra.mxu0 0.0
  %310 = vmatprep.subr.mxu0 0.0
  %311 = vmatpush2.msra.mxu0 0.0
  %312 = vmatprep.subr.mxu0 0.0
  %313 = vmatpush2.msra.mxu0 0.0
  %314 = vmatprep.subr.mxu0 0.0
  %315 = vmatpush2.msra.mxu0 0.0
  %316 = vmatprep.subr.mxu0 0.0
  %317 = vmatpush2.msra.mxu0 0.0
  %318 = vmatprep.subr.mxu0 0.0
  %319 = vmatpush2.msra.mxu0 0.0
  %320 = vmatprep.subr.mxu0 0.0
  %321 = vmatpush2.msra.mxu0 0.0
  %322 = vmatprep.subr.mxu0 0.0
  %323 = vmatpush2.msra.mxu0 0.0
  %324 = vmatprep.subr.mxu0 0.0
  %325 = vmatpush2.msra.mxu0 0.0
  %326 = vmatprep.subr.mxu0 0.0
  %327 = vmatpush2.msra.mxu0 0.0
  %328 = vmatprep.subr.mxu0 0.0
  %329 = vmatpush2.msra.mxu0 0.0
  %330 = vmatprep.subr.mxu0 0.0
  %331 = vmatpush2.msra.mxu0 0.0
  %332 = vmatprep.subr.mxu0 0.0
  %333 = vmatpush2.msra.mxu0 0.0
  %334 = vmatprep.subr.mxu0 0.0
  %335 = vmatpush2.msra.mxu0 0.0
  %336 = vmatprep.mubr.f32.mxu0 0.0
  %v337 = vand.u32 %v26, 4294901760
  %v338 = vsub.f32 %v26, %v337
  %v339 = vand.u32 %v338, 4294901760
  %340 = vmatmul.mubr.f32.gmra.mxu0 %v339
  %v341 = vpop.f32.mrf.mxu0
  %v342 = vadd.f32 %v266, %v341
  %v343 = vpop.f32.mrf.mxu0
  %v344 = vadd.f32 %v268, %v343
  %345 = vdwg.mxu0
  %346 = vmatprep.subr.mxu0 0.0
  %347 = vmatpush1.msra.mxu0 0.0
  %348 = vmatprep.subr.mxu0 0.0
  %349 = vmatpush1.msra.mxu0 0.0
  %350 = vmatprep.subr.mxu0 0.0
  %351 = vmatpush1.msra.mxu0 0.0
  %352 = vmatprep.subr.mxu0 0.0
  %353 = vmatpush1.msra.mxu0 0.0
  %354 = vmatprep.subr.mxu0 0.0
  %355 = vmatpush1.msra.mxu0 0.0
  %356 = vmatprep.subr.mxu0 0.0
  %357 = vmatpush1.msra.mxu0 0.0
  %358 = vmatprep.subr.mxu0 0.0
  %359 = vmatpush1.msra.mxu0 0.0
  %360 = vmatprep.subr.mxu0 0.0
  %361 = vmatpush1.msra.mxu0 0.0
  %362 = vmatprep.subr.mxu0 0.0
  %363 = vmatpush1.msra.mxu0 0.0
  %364 = vmatprep.subr.mxu0 0.0
  %365 = vmatpush1.msra.mxu0 0.0
  %366 = vmatprep.subr.mxu0 0.0
  %367 = vmatpush1.msra.mxu0 0.0
  %368 = vmatprep.subr.mxu0 0.0
  %369 = vmatpush1.msra.mxu0 0.0
  %370 = vmatprep.subr.mxu0 0.0
  %371 = vmatpush1.msra.mxu0 0.0
  %372 = vmatprep.subr.mxu0 0.0
  %373 = vmatpush1.msra.mxu0 0.0
  %374 = vmatprep.subr.mxu0 0.0
  %375 = vmatpush1.msra.mxu0 0.0
  %v376 = vand.u32 %v31, 4294901760
  %v377 = vsub.f32 %v31, %v376
  %v378 = vand.u32 %v377, 4294901760
  %379 = vmatprep.subr.mxu0 %v378
  %v380 = vand.u32 %v29, 4294901760
  %v381 = vsub.f32 %v29, %v380
  %v382 = vand.u32 %v381, 4294901760
  %383 = vmatpush1.msra.mxu0 %v382
  %384 = vmatprep.subr.mxu0 0.0
  %385 = vmatpush2.msra.mxu0 0.0
  %386 = vmatprep.subr.mxu0 0.0
  %387 = vmatpush2.msra.mxu0 0.0
  %388 = vmatprep.subr.mxu0 0.0
  %389 = vmatpush2.msra.mxu0 0.0
  %390 = vmatprep.subr.mxu0 0.0
  %391 = vmatpush2.msra.mxu0 0.0
  %392 = vmatprep.subr.mxu0 0.0
  %393 = vmatpush2.msra.mxu0 0.0
  %394 = vmatprep.subr.mxu0 0.0
  %395 = vmatpush2.msra.mxu0 0.0
  %396 = vmatprep.subr.mxu0 0.0
  %397 = vmatpush2.msra.mxu0 0.0
  %398 = vmatprep.subr.mxu0 0.0
  %399 = vmatpush2.msra.mxu0 0.0
  %400 = vmatprep.subr.mxu0 0.0
  %401 = vmatpush2.msra.mxu0 0.0
  %402 = vmatprep.subr.mxu0 0.0
  %403 = vmatpush2.msra.mxu0 0.0
  %404 = vmatprep.subr.mxu0 0.0
  %405 = vmatpush2.msra.mxu0 0.0
  %406 = vmatprep.subr.mxu0 0.0
  %407 = vmatpush2.msra.mxu0 0.0
  %408 = vmatprep.subr.mxu0 0.0
  %409 = vmatpush2.msra.mxu0 0.0
  %410 = vmatprep.subr.mxu0 0.0
  %411 = vmatpush2.msra.mxu0 0.0
  %412 = vmatprep.subr.mxu0 0.0
  %413 = vmatpush2.msra.mxu0 0.0
  %414 = vmatprep.subr.mxu0 0.0
  %415 = vmatpush2.msra.mxu0 0.0
  %416 = vmatprep.mubr.f32.mxu0 0.0
  %v417 = vand.u32 %v26, 4294901760
  %418 = vmatmul.mubr.f32.gmra.mxu0 %v417
  %v419 = vpop.f32.mrf.mxu0
  %v420 = vadd.f32 %v342, %v419
  %v421 = vpop.f32.mrf.mxu0
  %v422 = vadd.f32 %v344, %v421
  %423 = vdwg.mxu0
  %424 = vmatprep.subr.mxu0 0.0
  %425 = vmatpush1.msra.mxu0 0.0
  %426 = vmatprep.subr.mxu0 0.0
  %427 = vmatpush1.msra.mxu0 0.0
  %428 = vmatprep.subr.mxu0 0.0
  %429 = vmatpush1.msra.mxu0 0.0
  %430 = vmatprep.subr.mxu0 0.0
  %431 = vmatpush1.msra.mxu0 0.0
  %432 = vmatprep.subr.mxu0 0.0
  %433 = vmatpush1.msra.mxu0 0.0
  %434 = vmatprep.subr.mxu0 0.0
  %435 = vmatpush1.msra.mxu0 0.0
  %436 = vmatprep.subr.mxu0 0.0
  %437 = vmatpush1.msra.mxu0 0.0
  %438 = vmatprep.subr.mxu0 0.0
  %439 = vmatpush1.msra.mxu0 0.0
  %440 = vmatprep.subr.mxu0 0.0
  %441 = vmatpush1.msra.mxu0 0.0
  %442 = vmatprep.subr.mxu0 0.0
  %443 = vmatpush1.msra.mxu0 0.0
  %444 = vmatprep.subr.mxu0 0.0
  %445 = vmatpush1.msra.mxu0 0.0
  %446 = vmatprep.subr.mxu0 0.0
  %447 = vmatpush1.msra.mxu0 0.0
  %448 = vmatprep.subr.mxu0 0.0
  %449 = vmatpush1.msra.mxu0 0.0
  %450 = vmatprep.subr.mxu0 0.0
  %451 = vmatpush1.msra.mxu0 0.0
  %452 = vmatprep.subr.mxu0 0.0
  %453 = vmatpush1.msra.mxu0 0.0
  %v454 = vand.u32 %v31, 4294901760
  %455 = vmatprep.subr.mxu0 %v454
  %v456 = vand.u32 %v29, 4294901760
  %457 = vmatpush1.msra.mxu0 %v456
  %458 = vmatprep.subr.mxu0 0.0
  %459 = vmatpush2.msra.mxu0 0.0
  %460 = vmatprep.subr.mxu0 0.0
  %461 = vmatpush2.msra.mxu0 0.0
  %462 = vmatprep.subr.mxu0 0.0
  %463 = vmatpush2.msra.mxu0 0.0
  %464 = vmatprep.subr.mxu0 0.0
  %465 = vmatpush2.msra.mxu0 0.0
  %466 = vmatprep.subr.mxu0 0.0
  %467 = vmatpush2.msra.mxu0 0.0
  %468 = vmatprep.subr.mxu0 0.0
  %469 = vmatpush2.msra.mxu0 0.0
  %470 = vmatprep.subr.mxu0 0.0
  %471 = vmatpush2.msra.mxu0 0.0
  %472 = vmatprep.subr.mxu0 0.0
  %473 = vmatpush2.msra.mxu0 0.0
  %474 = vmatprep.subr.mxu0 0.0
  %475 = vmatpush2.msra.mxu0 0.0
  %476 = vmatprep.subr.mxu0 0.0
  %477 = vmatpush2.msra.mxu0 0.0
  %478 = vmatprep.subr.mxu0 0.0
  %479 = vmatpush2.msra.mxu0 0.0
  %480 = vmatprep.subr.mxu0 0.0
  %481 = vmatpush2.msra.mxu0 0.0
  %482 = vmatprep.subr.mxu0 0.0
  %483 = vmatpush2.msra.mxu0 0.0
  %484 = vmatprep.subr.mxu0 0.0
  %485 = vmatpush2.msra.mxu0 0.0
  %486 = vmatprep.subr.mxu0 0.0
  %487 = vmatpush2.msra.mxu0 0.0
  %488 = vmatprep.subr.mxu0 0.0
  %489 = vmatpush2.msra.mxu0 0.0
  %490 = vmatprep.mubr.f32.mxu0 0.0
  %v491 = vand.u32 %v26, 4294901760
  %492 = vmatmul.mubr.f32.gmra.mxu0 %v491
  %v493 = vpop.f32.mrf.mxu0
  %v494 = vadd.f32 %v420, %v493
  %v495 = vpop.f32.mrf.mxu0
  %v496 = vadd.f32 %v422, %v495
  %497 = vdwg.mxu0
  %498 = vst [vmem:[%s3] sm:$0xff] %v494
  %499 = vst [vmem:[%s3 + $0x8] sm:$0xff] %v496
  %s500 = scalar_lea.vmem %s0, 8
  %v501 = vld [vmem:[%s500] sm:$0xff]
  %v503 = vcombine.high %v501, %v501
  %v504 = vsel %vm28, %v501, 0
  %v506 = vsel %vm28, %v503, 0
  %508 = vmatprep.subr.mxu0 0.0
  %509 = vmatpush1.msra.mxu0 0.0
  %510 = vmatprep.subr.mxu0 0.0
  %511 = vmatpush1.msra.mxu0 0.0
  %512 = vmatprep.subr.mxu0 0.0
  %513 = vmatpush1.msra.mxu0 0.0
  %514 = vmatprep.subr.mxu0 0.0
  %515 = vmatpush1.msra.mxu0 0.0
  %516 = vmatprep.subr.mxu0 0.0
  %517 = vmatpush1.msra.mxu0 0.0
  %518 = vmatprep.subr.mxu0 0.0
  %519 = vmatpush1.msra.mxu0 0.0
  %520 = vmatprep.subr.mxu0 0.0
  %521 = vmatpush1.msra.mxu0 0.0
  %522 = vmatprep.subr.mxu0 0.0
  %523 = vmatpush1.msra.mxu0 0.0
  %524 = vmatprep.subr.mxu0 0.0
  %525 = vmatpush1.msra.mxu0 0.0
  %526 = vmatprep.subr.mxu0 0.0
  %527 = vmatpush1.msra.mxu0 0.0
  %528 = vmatprep.subr.mxu0 0.0
  %529 = vmatpush1.msra.mxu0 0.0
  %530 = vmatprep.subr.mxu0 0.0
  %531 = vmatpush1.msra.mxu0 0.0
  %532 = vmatprep.subr.mxu0 0.0
  %533 = vmatpush1.msra.mxu0 0.0
  %534 = vmatprep.subr.mxu0 0.0
  %535 = vmatpush1.msra.mxu0 0.0
  %536 = vmatprep.subr.mxu0 0.0
  %537 = vmatpush1.msra.mxu0 0.0
  %v538 = vand.u32 %v506, 4294901760
  %539 = vmatprep.subr.mxu0 %v538
  %v540 = vand.u32 %v504, 4294901760
  %541 = vmatpush1.msra.mxu0 %v540
  %542 = vmatprep.subr.mxu0 0.0
  %543 = vmatpush2.msra.mxu0 0.0
  %544 = vmatprep.subr.mxu0 0.0
  %545 = vmatpush2.msra.mxu0 0.0
  %546 = vmatprep.subr.mxu0 0.0
  %547 = vmatpush2.msra.mxu0 0.0
  %548 = vmatprep.subr.mxu0 0.0
  %549 = vmatpush2.msra.mxu0 0.0
  %550 = vmatprep.subr.mxu0 0.0
  %551 = vmatpush2.msra.mxu0 0.0
  %552 = vmatprep.subr.mxu0 0.0
  %553 = vmatpush2.msra.mxu0 0.0
  %554 = vmatprep.subr.mxu0 0.0
  %555 = vmatpush2.msra.mxu0 0.0
  %556 = vmatprep.subr.mxu0 0.0
  %557 = vmatpush2.msra.mxu0 0.0
  %558 = vmatprep.subr.mxu0 0.0
  %559 = vmatpush2.msra.mxu0 0.0
  %560 = vmatprep.subr.mxu0 0.0
  %561 = vmatpush2.msra.mxu0 0.0
  %562 = vmatprep.subr.mxu0 0.0
  %563 = vmatpush2.msra.mxu0 0.0
  %564 = vmatprep.subr.mxu0 0.0
  %565 = vmatpush2.msra.mxu0 0.0
  %566 = vmatprep.subr.mxu0 0.0
  %567 = vmatpush2.msra.mxu0 0.0
  %568 = vmatprep.subr.mxu0 0.0
  %569 = vmatpush2.msra.mxu0 0.0
  %570 = vmatprep.subr.mxu0 0.0
  %571 = vmatpush2.msra.mxu0 0.0
  %572 = vmatprep.subr.mxu0 0.0
  %573 = vmatpush2.msra.mxu0 0.0
  %574 = vmatprep.mubr.f32.mxu0 0.0
  %v575 = vand.u32 %v26, 4294901760
  %v576 = vsub.f32 %v26, %v575
  %v577 = vand.u32 %v576, 4294901760
  %v578 = vsub.f32 %v576, %v577
  %v579 = vand.u32 %v578, 4294901760
  %580 = vmatmul.mubr.f32.gmra.mxu0 %v579
  %v581 = vpop.f32.mrf.mxu0
  %v582 = vadd.f32 %v20, %v581
  %v583 = vpop.f32.mrf.mxu0
  %v584 = vadd.f32 %v20, %v583
  %585 = vdwg.mxu0
  %586 = vmatprep.subr.mxu0 0.0
  %587 = vmatpush1.msra.mxu0 0.0
  %588 = vmatprep.subr.mxu0 0.0
  %589 = vmatpush1.msra.mxu0 0.0
  %590 = vmatprep.subr.mxu0 0.0
  %591 = vmatpush1.msra.mxu0 0.0
  %592 = vmatprep.subr.mxu0 0.0
  %593 = vmatpush1.msra.mxu0 0.0
  %594 = vmatprep.subr.mxu0 0.0
  %595 = vmatpush1.msra.mxu0 0.0
  %596 = vmatprep.subr.mxu0 0.0
  %597 = vmatpush1.msra.mxu0 0.0
  %598 = vmatprep.subr.mxu0 0.0
  %599 = vmatpush1.msra.mxu0 0.0
  %600 = vmatprep.subr.mxu0 0.0
  %601 = vmatpush1.msra.mxu0 0.0
  %602 = vmatprep.subr.mxu0 0.0
  %603 = vmatpush1.msra.mxu0 0.0
  %604 = vmatprep.subr.mxu0 0.0
  %605 = vmatpush1.msra.mxu0 0.0
  %606 = vmatprep.subr.mxu0 0.0
  %607 = vmatpush1.msra.mxu0 0.0
  %608 = vmatprep.subr.mxu0 0.0
  %609 = vmatpush1.msra.mxu0 0.0
  %610 = vmatprep.subr.mxu0 0.0
  %611 = vmatpush1.msra.mxu0 0.0
  %612 = vmatprep.subr.mxu0 0.0
  %613 = vmatpush1.msra.mxu0 0.0
  %614 = vmatprep.subr.mxu0 0.0
  %615 = vmatpush1.msra.mxu0 0.0
  %v616 = vand.u32 %v506, 4294901760
  %v617 = vsub.f32 %v506, %v616
  %v618 = vand.u32 %v617, 4294901760
  %v619 = vsub.f32 %v617, %v618
  %v620 = vand.u32 %v619, 4294901760
  %621 = vmatprep.subr.mxu0 %v620
  %v622 = vand.u32 %v504, 4294901760
  %v623 = vsub.f32 %v504, %v622
  %v624 = vand.u32 %v623, 4294901760
  %v625 = vsub.f32 %v623, %v624
  %v626 = vand.u32 %v625, 4294901760
  %627 = vmatpush1.msra.mxu0 %v626
  %628 = vmatprep.subr.mxu0 0.0
  %629 = vmatpush2.msra.mxu0 0.0
  %630 = vmatprep.subr.mxu0 0.0
  %631 = vmatpush2.msra.mxu0 0.0
  %632 = vmatprep.subr.mxu0 0.0
  %633 = vmatpush2.msra.mxu0 0.0
  %634 = vmatprep.subr.mxu0 0.0
  %635 = vmatpush2.msra.mxu0 0.0
  %636 = vmatprep.subr.mxu0 0.0
  %637 = vmatpush2.msra.mxu0 0.0
  %638 = vmatprep.subr.mxu0 0.0
  %639 = vmatpush2.msra.mxu0 0.0
  %640 = vmatprep.subr.mxu0 0.0
  %641 = vmatpush2.msra.mxu0 0.0
  %642 = vmatprep.subr.mxu0 0.0
  %643 = vmatpush2.msra.mxu0 0.0
  %644 = vmatprep.subr.mxu0 0.0
  %645 = vmatpush2.msra.mxu0 0.0
  %646 = vmatprep.subr.mxu0 0.0
  %647 = vmatpush2.msra.mxu0 0.0
  %648 = vmatprep.subr.mxu0 0.0
  %649 = vmatpush2.msra.mxu0 0.0
  %650 = vmatprep.subr.mxu0 0.0
  %651 = vmatpush2.msra.mxu0 0.0
  %652 = vmatprep.subr.mxu0 0.0
  %653 = vmatpush2.msra.mxu0 0.0
  %654 = vmatprep.subr.mxu0 0.0
  %655 = vmatpush2.msra.mxu0 0.0
  %656 = vmatprep.subr.mxu0 0.0
  %657 = vmatpush2.msra.mxu0 0.0
  %658 = vmatprep.subr.mxu0 0.0
  %659 = vmatpush2.msra.mxu0 0.0
  %660 = vmatprep.mubr.f32.mxu0 0.0
  %v661 = vand.u32 %v26, 4294901760
  %662 = vmatmul.mubr.f32.gmra.mxu0 %v661
  %v663 = vpop.f32.mrf.mxu0
  %v664 = vadd.f32 %v582, %v663
  %v665 = vpop.f32.mrf.mxu0
  %v666 = vadd.f32 %v584, %v665
  %667 = vdwg.mxu0
  %668 = vmatprep.subr.mxu0 0.0
  %669 = vmatpush1.msra.mxu0 0.0
  %670 = vmatprep.subr.mxu0 0.0
  %671 = vmatpush1.msra.mxu0 0.0
  %672 = vmatprep.subr.mxu0 0.0
  %673 = vmatpush1.msra.mxu0 0.0
  %674 = vmatprep.subr.mxu0 0.0
  %675 = vmatpush1.msra.mxu0 0.0
  %676 = vmatprep.subr.mxu0 0.0
  %677 = vmatpush1.msra.mxu0 0.0
  %678 = vmatprep.subr.mxu0 0.0
  %679 = vmatpush1.msra.mxu0 0.0
  %680 = vmatprep.subr.mxu0 0.0
  %681 = vmatpush1.msra.mxu0 0.0
  %682 = vmatprep.subr.mxu0 0.0
  %683 = vmatpush1.msra.mxu0 0.0
  %684 = vmatprep.subr.mxu0 0.0
  %685 = vmatpush1.msra.mxu0 0.0
  %686 = vmatprep.subr.mxu0 0.0
  %687 = vmatpush1.msra.mxu0 0.0
  %688 = vmatprep.subr.mxu0 0.0
  %689 = vmatpush1.msra.mxu0 0.0
  %690 = vmatprep.subr.mxu0 0.0
  %691 = vmatpush1.msra.mxu0 0.0
  %692 = vmatprep.subr.mxu0 0.0
  %693 = vmatpush1.msra.mxu0 0.0
  %694 = vmatprep.subr.mxu0 0.0
  %695 = vmatpush1.msra.mxu0 0.0
  %696 = vmatprep.subr.mxu0 0.0
  %697 = vmatpush1.msra.mxu0 0.0
  %v698 = vand.u32 %v506, 4294901760
  %v699 = vsub.f32 %v506, %v698
  %700 = vmatprep.subr.mxu0 %v699
  %v701 = vand.u32 %v504, 4294901760
  %v702 = vsub.f32 %v504, %v701
  %703 = vmatpush1.msra.mxu0 %v702
  %704 = vmatprep.subr.mxu0 0.0
  %705 = vmatpush2.msra.mxu0 0.0
  %706 = vmatprep.subr.mxu0 0.0
  %707 = vmatpush2.msra.mxu0 0.0
  %708 = vmatprep.subr.mxu0 0.0
  %709 = vmatpush2.msra.mxu0 0.0
  %710 = vmatprep.subr.mxu0 0.0
  %711 = vmatpush2.msra.mxu0 0.0
  %712 = vmatprep.subr.mxu0 0.0
  %713 = vmatpush2.msra.mxu0 0.0
  %714 = vmatprep.subr.mxu0 0.0
  %715 = vmatpush2.msra.mxu0 0.0
  %716 = vmatprep.subr.mxu0 0.0
  %717 = vmatpush2.msra.mxu0 0.0
  %718 = vmatprep.subr.mxu0 0.0
  %719 = vmatpush2.msra.mxu0 0.0
  %720 = vmatprep.subr.mxu0 0.0
  %721 = vmatpush2.msra.mxu0 0.0
  %722 = vmatprep.subr.mxu0 0.0
  %723 = vmatpush2.msra.mxu0 0.0
  %724 = vmatprep.subr.mxu0 0.0
  %725 = vmatpush2.msra.mxu0 0.0
  %726 = vmatprep.subr.mxu0 0.0
  %727 = vmatpush2.msra.mxu0 0.0
  %728 = vmatprep.subr.mxu0 0.0
  %729 = vmatpush2.msra.mxu0 0.0
  %730 = vmatprep.subr.mxu0 0.0
  %731 = vmatpush2.msra.mxu0 0.0
  %732 = vmatprep.subr.mxu0 0.0
  %733 = vmatpush2.msra.mxu0 0.0
  %734 = vmatprep.subr.mxu0 0.0
  %735 = vmatpush2.msra.mxu0 0.0
  %736 = vmatprep.mubr.f32.mxu0 0.0
  %v737 = vand.u32 %v26, 4294901760
  %v738 = vsub.f32 %v26, %v737
  %739 = vmatmul.mubr.f32.gmra.mxu0 %v738
  %v740 = vpop.f32.mrf.mxu0
  %v741 = vadd.f32 %v664, %v740
  %v742 = vpop.f32.mrf.mxu0
  %v743 = vadd.f32 %v666, %v742
  %744 = vdwg.mxu0
  %745 = vmatprep.subr.mxu0 0.0
  %746 = vmatpush1.msra.mxu0 0.0
  %747 = vmatprep.subr.mxu0 0.0
  %748 = vmatpush1.msra.mxu0 0.0
  %749 = vmatprep.subr.mxu0 0.0
  %750 = vmatpush1.msra.mxu0 0.0
  %751 = vmatprep.subr.mxu0 0.0
  %752 = vmatpush1.msra.mxu0 0.0
  %753 = vmatprep.subr.mxu0 0.0
  %754 = vmatpush1.msra.mxu0 0.0
  %755 = vmatprep.subr.mxu0 0.0
  %756 = vmatpush1.msra.mxu0 0.0
  %757 = vmatprep.subr.mxu0 0.0
  %758 = vmatpush1.msra.mxu0 0.0
  %759 = vmatprep.subr.mxu0 0.0
  %760 = vmatpush1.msra.mxu0 0.0
  %761 = vmatprep.subr.mxu0 0.0
  %762 = vmatpush1.msra.mxu0 0.0
  %763 = vmatprep.subr.mxu0 0.0
  %764 = vmatpush1.msra.mxu0 0.0
  %765 = vmatprep.subr.mxu0 0.0
  %766 = vmatpush1.msra.mxu0 0.0
  %767 = vmatprep.subr.mxu0 0.0
  %768 = vmatpush1.msra.mxu0 0.0
  %769 = vmatprep.subr.mxu0 0.0
  %770 = vmatpush1.msra.mxu0 0.0
  %771 = vmatprep.subr.mxu0 0.0
  %772 = vmatpush1.msra.mxu0 0.0
  %773 = vmatprep.subr.mxu0 0.0
  %774 = vmatpush1.msra.mxu0 0.0
  %v775 = vand.u32 %v506, 4294901760
  %776 = vmatprep.subr.mxu0 %v775
  %v777 = vand.u32 %v504, 4294901760
  %778 = vmatpush1.msra.mxu0 %v777
  %779 = vmatprep.subr.mxu0 0.0
  %780 = vmatpush2.msra.mxu0 0.0
  %781 = vmatprep.subr.mxu0 0.0
  %782 = vmatpush2.msra.mxu0 0.0
  %783 = vmatprep.subr.mxu0 0.0
  %784 = vmatpush2.msra.mxu0 0.0
  %785 = vmatprep.subr.mxu0 0.0
  %786 = vmatpush2.msra.mxu0 0.0
  %787 = vmatprep.subr.mxu0 0.0
  %788 = vmatpush2.msra.mxu0 0.0
  %789 = vmatprep.subr.mxu0 0.0
  %790 = vmatpush2.msra.mxu0 0.0
  %791 = vmatprep.subr.mxu0 0.0
  %792 = vmatpush2.msra.mxu0 0.0
  %793 = vmatprep.subr.mxu0 0.0
  %794 = vmatpush2.msra.mxu0 0.0
  %795 = vmatprep.subr.mxu0 0.0
  %796 = vmatpush2.msra.mxu0 0.0
  %797 = vmatprep.subr.mxu0 0.0
  %798 = vmatpush2.msra.mxu0 0.0
  %799 = vmatprep.subr.mxu0 0.0
  %800 = vmatpush2.msra.mxu0 0.0
  %801 = vmatprep.subr.mxu0 0.0
  %802 = vmatpush2.msra.mxu0 0.0
  %803 = vmatprep.subr.mxu0 0.0
  %804 = vmatpush2.msra.mxu0 0.0
  %805 = vmatprep.subr.mxu0 0.0
  %806 = vmatpush2.msra.mxu0 0.0
  %807 = vmatprep.subr.mxu0 0.0
  %808 = vmatpush2.msra.mxu0 0.0
  %809 = vmatprep.subr.mxu0 0.0
  %810 = vmatpush2.msra.mxu0 0.0
  %811 = vmatprep.mubr.f32.mxu0 0.0
  %v812 = vand.u32 %v26, 4294901760
  %v813 = vsub.f32 %v26, %v812
  %v814 = vand.u32 %v813, 4294901760
  %815 = vmatmul.mubr.f32.gmra.mxu0 %v814
  %v816 = vpop.f32.mrf.mxu0
  %v817 = vadd.f32 %v741, %v816
  %v818 = vpop.f32.mrf.mxu0
  %v819 = vadd.f32 %v743, %v818
  %820 = vdwg.mxu0
  %821 = vmatprep.subr.mxu0 0.0
  %822 = vmatpush1.msra.mxu0 0.0
  %823 = vmatprep.subr.mxu0 0.0
  %824 = vmatpush1.msra.mxu0 0.0
  %825 = vmatprep.subr.mxu0 0.0
  %826 = vmatpush1.msra.mxu0 0.0
  %827 = vmatprep.subr.mxu0 0.0
  %828 = vmatpush1.msra.mxu0 0.0
  %829 = vmatprep.subr.mxu0 0.0
  %830 = vmatpush1.msra.mxu0 0.0
  %831 = vmatprep.subr.mxu0 0.0
  %832 = vmatpush1.msra.mxu0 0.0
  %833 = vmatprep.subr.mxu0 0.0
  %834 = vmatpush1.msra.mxu0 0.0
  %835 = vmatprep.subr.mxu0 0.0
  %836 = vmatpush1.msra.mxu0 0.0
  %837 = vmatprep.subr.mxu0 0.0
  %838 = vmatpush1.msra.mxu0 0.0
  %839 = vmatprep.subr.mxu0 0.0
  %840 = vmatpush1.msra.mxu0 0.0
  %841 = vmatprep.subr.mxu0 0.0
  %842 = vmatpush1.msra.mxu0 0.0
  %843 = vmatprep.subr.mxu0 0.0
  %844 = vmatpush1.msra.mxu0 0.0
  %845 = vmatprep.subr.mxu0 0.0
  %846 = vmatpush1.msra.mxu0 0.0
  %847 = vmatprep.subr.mxu0 0.0
  %848 = vmatpush1.msra.mxu0 0.0
  %849 = vmatprep.subr.mxu0 0.0
  %850 = vmatpush1.msra.mxu0 0.0
  %v851 = vand.u32 %v506, 4294901760
  %v852 = vsub.f32 %v506, %v851
  %v853 = vand.u32 %v852, 4294901760
  %854 = vmatprep.subr.mxu0 %v853
  %v855 = vand.u32 %v504, 4294901760
  %v856 = vsub.f32 %v504, %v855
  %v857 = vand.u32 %v856, 4294901760
  %858 = vmatpush1.msra.mxu0 %v857
  %859 = vmatprep.subr.mxu0 0.0
  %860 = vmatpush2.msra.mxu0 0.0
  %861 = vmatprep.subr.mxu0 0.0
  %862 = vmatpush2.msra.mxu0 0.0
  %863 = vmatprep.subr.mxu0 0.0
  %864 = vmatpush2.msra.mxu0 0.0
  %865 = vmatprep.subr.mxu0 0.0
  %866 = vmatpush2.msra.mxu0 0.0
  %867 = vmatprep.subr.mxu0 0.0
  %868 = vmatpush2.msra.mxu0 0.0
  %869 = vmatprep.subr.mxu0 0.0
  %870 = vmatpush2.msra.mxu0 0.0
  %871 = vmatprep.subr.mxu0 0.0
  %872 = vmatpush2.msra.mxu0 0.0
  %873 = vmatprep.subr.mxu0 0.0
  %874 = vmatpush2.msra.mxu0 0.0
  %875 = vmatprep.subr.mxu0 0.0
  %876 = vmatpush2.msra.mxu0 0.0
  %877 = vmatprep.subr.mxu0 0.0
  %878 = vmatpush2.msra.mxu0 0.0
  %879 = vmatprep.subr.mxu0 0.0
  %880 = vmatpush2.msra.mxu0 0.0
  %881 = vmatprep.subr.mxu0 0.0
  %882 = vmatpush2.msra.mxu0 0.0
  %883 = vmatprep.subr.mxu0 0.0
  %884 = vmatpush2.msra.mxu0 0.0
  %885 = vmatprep.subr.mxu0 0.0
  %886 = vmatpush2.msra.mxu0 0.0
  %887 = vmatprep.subr.mxu0 0.0
  %888 = vmatpush2.msra.mxu0 0.0
  %889 = vmatprep.subr.mxu0 0.0
  %890 = vmatpush2.msra.mxu0 0.0
  %891 = vmatprep.mubr.f32.mxu0 0.0
  %v892 = vand.u32 %v26, 4294901760
  %893 = vmatmul.mubr.f32.gmra.mxu0 %v892
  %v894 = vpop.f32.mrf.mxu0
  %v895 = vadd.f32 %v817, %v894
  %v896 = vpop.f32.mrf.mxu0
  %v897 = vadd.f32 %v819, %v896
  %898 = vdwg.mxu0
  %899 = vmatprep.subr.mxu0 0.0
  %900 = vmatpush1.msra.mxu0 0.0
  %901 = vmatprep.subr.mxu0 0.0
  %902 = vmatpush1.msra.mxu0 0.0
  %903 = vmatprep.subr.mxu0 0.0
  %904 = vmatpush1.msra.mxu0 0.0
  %905 = vmatprep.subr.mxu0 0.0
  %906 = vmatpush1.msra.mxu0 0.0
  %907 = vmatprep.subr.mxu0 0.0
  %908 = vmatpush1.msra.mxu0 0.0
  %909 = vmatprep.subr.mxu0 0.0
  %910 = vmatpush1.msra.mxu0 0.0
  %911 = vmatprep.subr.mxu0 0.0
  %912 = vmatpush1.msra.mxu0 0.0
  %913 = vmatprep.subr.mxu0 0.0
  %914 = vmatpush1.msra.mxu0 0.0
  %915 = vmatprep.subr.mxu0 0.0
  %916 = vmatpush1.msra.mxu0 0.0
  %917 = vmatprep.subr.mxu0 0.0
  %918 = vmatpush1.msra.mxu0 0.0
  %919 = vmatprep.subr.mxu0 0.0
  %920 = vmatpush1.msra.mxu0 0.0
  %921 = vmatprep.subr.mxu0 0.0
  %922 = vmatpush1.msra.mxu0 0.0
  %923 = vmatprep.subr.mxu0 0.0
  %924 = vmatpush1.msra.mxu0 0.0
  %925 = vmatprep.subr.mxu0 0.0
  %926 = vmatpush1.msra.mxu0 0.0
  %927 = vmatprep.subr.mxu0 0.0
  %928 = vmatpush1.msra.mxu0 0.0
  %v929 = vand.u32 %v506, 4294901760
  %930 = vmatprep.subr.mxu0 %v929
  %v931 = vand.u32 %v504, 4294901760
  %932 = vmatpush1.msra.mxu0 %v931
  %933 = vmatprep.subr.mxu0 0.0
  %934 = vmatpush2.msra.mxu0 0.0
  %935 = vmatprep.subr.mxu0 0.0
  %936 = vmatpush2.msra.mxu0 0.0
  %937 = vmatprep.subr.mxu0 0.0
  %938 = vmatpush2.msra.mxu0 0.0
  %939 = vmatprep.subr.mxu0 0.0
  %940 = vmatpush2.msra.mxu0 0.0
  %941 = vmatprep.subr.mxu0 0.0
  %942 = vmatpush2.msra.mxu0 0.0
  %943 = vmatprep.subr.mxu0 0.0
  %944 = vmatpush2.msra.mxu0 0.0
  %945 = vmatprep.subr.mxu0 0.0
  %946 = vmatpush2.msra.mxu0 0.0
  %947 = vmatprep.subr.mxu0 0.0
  %948 = vmatpush2.msra.mxu0 0.0
  %949 = vmatprep.subr.mxu0 0.0
  %950 = vmatpush2.msra.mxu0 0.0
  %951 = vmatprep.subr.mxu0 0.0
  %952 = vmatpush2.msra.mxu0 0.0
  %953 = vmatprep.subr.mxu0 0.0
  %954 = vmatpush2.msra.mxu0 0.0
  %955 = vmatprep.subr.mxu0 0.0
  %956 = vmatpush2.msra.mxu0 0.0
  %957 = vmatprep.subr.mxu0 0.0
  %958 = vmatpush2.msra.mxu0 0.0
  %959 = vmatprep.subr.mxu0 0.0
  %960 = vmatpush2.msra.mxu0 0.0
  %961 = vmatprep.subr.mxu0 0.0
  %962 = vmatpush2.msra.mxu0 0.0
  %963 = vmatprep.subr.mxu0 0.0
  %964 = vmatpush2.msra.mxu0 0.0
  %965 = vmatprep.mubr.f32.mxu0 0.0
  %v966 = vand.u32 %v26, 4294901760
  %967 = vmatmul.mubr.f32.gmra.mxu0 %v966
  %v968 = vpop.f32.mrf.mxu0
  %v969 = vadd.f32 %v895, %v968
  %v970 = vpop.f32.mrf.mxu0
  %v971 = vadd.f32 %v897, %v970
  %972 = vdwg.mxu0
  %s973 = scalar_lea.vmem %s3, 16
  %974 = vst [vmem:[%s973] sm:$0xff] %v969
  %975 = vst [vmem:[%s973 + $0x8] sm:$0xff] %v971
  // Predicated region
  $region14: #{conv_out_forward.1} parent=0 // pred_check
    _
  $region15: #{conv_out_forward.1} parent=0 // pred_check_branch
    %977 = sbr.rel (0) target = $region17
  $region16: #{conv_out_forward.1} parent=0 // pred_region
    _
  $region17: #{conv_out_forward.1} parent=0 // pred_fallthru
    _
  // Predicated region
  $region18: #{conv_out_forward.1} parent=0 // pred_check
    _
  $region19: #{conv_out_forward.1} parent=0 // pred_check_branch
    %979 = sbr.rel (0) target = $region21
  $region20: #{conv_out_forward.1} parent=0 // pred_region
    _
  $region21: #{conv_out_forward.1} parent=0 // pred_fallthru
    _

</llo_original>
